<compile_context>
chip_gen: v6e
topology: v6e:2x2x1
jax: 0.10.0
libtpu: 0.0.40
codegen_flags: <defaults>
</compile_context>

<pallas_src>
import math
from functools import lru_cache, partial

import numpy as np
import jax
import jax.numpy as jnp
from jax.experimental import pallas as pl
from jax.experimental.pallas import tpu as pltpu


def _round_up(x: int, m: int) -> int:
    return (x + m - 1) // m * m


# ----------------------------------------------------------------------------
# Kernel: factorized low-pass projection.
#   t = x_tile @ F            (TB, 2K_pad)  -- computed once per batch tile
#   y = t @ C[:, j-th slab]   (TB, TN)      -- per output-column slab
# ----------------------------------------------------------------------------
def _spectral_truncate_kernel(x_ref, f_ref, c_ref, o_ref, t_ref):
    @pl.when(pl.program_id(1) == 0)
    def _():
        t_ref[...] = jnp.dot(
            x_ref[...], f_ref[...], preferred_element_type=jnp.float32
        )

    o_ref[...] = jnp.dot(
        t_ref[...].astype(c_ref.dtype), c_ref[...],
        preferred_element_type=jnp.float32,
    ).astype(o_ref.dtype)


# ----------------------------------------------------------------------------
# Host-side (cached) construction of the factorized projection operands.
# ----------------------------------------------------------------------------
@lru_cache(maxsize=None)
def _dft_factors(n: int, modes1: int, dtype_name: str):
    k_full = n // 2 + 1
    k = min(modes1, k_full)                 # keeping more modes than exist = no-op
    kp2 = max(128, _round_up(2 * k, 128))   # lane-dense contraction width

    # Integer index products reduced mod N *before* scaling by 2*pi/N, so the
    # cos/sin arguments stay in [0, 2*pi) regardless of N * modes1.
    nn = np.arange(n, dtype=np.int64)
    kk = np.arange(k, dtype=np.int64)
    w = 2.0 * np.pi / n
    ang_fwd = w * ((nn[:, None] * kk[None, :]) % n).astype(np.float64)   # (N, K)
    ang_inv = w * ((kk[:, None] * nn[None, :]) % n).astype(np.float64)   # (K, N)
    inv_sqrt_n = 1.0 / math.sqrt(n)

    # Forward (normalized, onesided) rfft basis:
    #   Re X[k] =  (1/sqrt(N)) sum_n x[n] cos(theta)
    #   Im X[k] = -(1/sqrt(N)) sum_n x[n] sin(theta)
    fcos = np.cos(ang_fwd) * inv_sqrt_n
    fsin = -np.sin(ang_fwd) * inv_sqrt_n

    # Onesided normalized irfft weights: DC (and Nyquist for even N) count
    # once, every other kept mode counts twice.
    idx = np.arange(k)
    is_nyq = (n % 2 == 0) & (idx == n // 2)
    cw = np.where((idx == 0) | is_nyq, 1.0, 2.0)
    cr = cw[:, None] * np.cos(ang_inv) * inv_sqrt_n
    ci = -cw[:, None] * np.sin(ang_inv) * inv_sqrt_n

    f = np.zeros((n, kp2), dtype=np.float64)
    f[:, :k] = fcos
    f[:, k:2 * k] = fsin
    c = np.zeros((kp2, n), dtype=np.float64)
    c[:k, :] = cr
    c[k:2 * k, :] = ci

    dtype = jnp.dtype(dtype_name)
    return jnp.asarray(f, dtype=dtype), jnp.asarray(c, dtype=dtype)


# ----------------------------------------------------------------------------
# Tile selection.
# ----------------------------------------------------------------------------
def _pick_col_tile(n: int) -> int:
    """Output-column slab width: full N when moderate, else the largest
    multiple-of-128 divisor of N that is <= 1024 (lane-dense, VMEM-bounded)."""
    if n % 128 != 0 or n <= 2048:
        return n
    for t in range(1024, 127, -128):
        if n % t == 0:
            return t
    return n  # unreachable when n % 128 == 0


def _pick_batch_tile(b_pad: int, batch_tile: int, sub: int, n: int,
                     itemsize: int) -> int:
    """Largest divisor of b_pad (multiple of `sub`) such that the
    double-buffered (tb, N) x tile stays <= ~16 MiB of VMEM; if that leaves a
    single batch-grid step and the batch allows it, split so both v7x
    TensorCores get work."""
    cap_rows = max(sub, ((16 << 20) // max(1, 2 * n * itemsize)) // sub * sub)
    cap = max(sub, (min(batch_tile, cap_rows, b_pad) // sub) * sub)
    tb = sub
    t = cap
    while t >= sub:
        if b_pad % t == 0:
            tb = t
            break
        t -= sub
    if b_pad // tb == 1 and b_pad >= 2 * sub:
        half = max(sub, (b_pad // 2) // sub * sub)
        if b_pad % half == 0:
            tb = half
    return tb


# ----------------------------------------------------------------------------
# Pallas call.
# ----------------------------------------------------------------------------
@partial(jax.jit, static_argnames=("tb", "tn", "compute_dtype"))
def _run(x, f, c, *, tb, tn, compute_dtype):
    b, n = x.shape
    out_dtype = x.dtype
    kp2 = f.shape[1]

    b_pad = _round_up(b, tb)          # == round_up(b, sublane) by construction
    if b_pad != b:
        x = jnp.pad(x, ((0, b_pad - b), (0, 0)))
    x = x.astype(compute_dtype)

    grid = (b_pad // tb, n // tn)
    isz = jnp.dtype(compute_dtype).itemsize
    osz = jnp.dtype(out_dtype).itemsize

    # Double-buffered x/out/C tiles + resident F + f32 intermediate + slack.
    vmem_needed = (
        (2 * tb * n + 2 * n * kp2 + 2 * kp2 * tn) * isz
        + 2 * tb * tn * osz
        + tb * kp2 * 4
        + (2 << 20)
    )
    vmem_limit = int(min(64 << 20, max(32 << 20, vmem_needed)))

    cost = pl.CostEstimate(
        flops=int(4 * b_pad * n * kp2),
        transcendentals=0,
        bytes_accessed=int(b_pad * n * isz + b_pad * n * osz
                           + 2 * n * kp2 * isz),
    )

    y = pl.pallas_call(
        _spectral_truncate_kernel,
        out_shape=jax.ShapeDtypeStruct((b_pad, n), out_dtype),
        grid_spec=pltpu.PrefetchScalarGridSpec(
            num_scalar_prefetch=0,
            grid=grid,
            in_specs=[
                # x batch tile: changes only with i (never re-DMA'd across j).
                pl.BlockSpec((tb, n), lambda i, j: (i, 0)),
                # F: grid-invariant -> read from HBM once, VMEM-resident.
                pl.BlockSpec((n, kp2), lambda i, j: (0, 0)),
                # C column slab: invariant along i, tiled along j.
                pl.BlockSpec((kp2, tn), lambda i, j: (0, j)),
            ],
            out_specs=pl.BlockSpec((tb, tn), lambda i, j: (i, j)),
            scratch_shapes=[pltpu.VMEM((tb, kp2), jnp.float32)],
        ),
        compiler_params=pltpu.CompilerParams(
            # Batch axis shardable across v7x TensorCores; column-slab axis is
            # "arbitrary" so the intermediate scratch is reused in order.
            dimension_semantics=("parallel", "arbitrary"),
            vmem_limit_bytes=vmem_limit,
        ),
        cost_estimate=cost,
    )(x, f, c)

    return y[:b] if b_pad != b else y


def spectral_truncate(x, *, modes1: int, batch_tile: int = 256,
                      compute_dtype=jnp.float32):
    """y = irfft(truncate_{modes1}(rfft(x, ortho)), n=N, ortho) along last dim.

    x: (B, N) float.  Returns (B, N) with x's dtype.
    compute_dtype: jnp.float32 (default, ~1e-5 exact) or jnp.bfloat16
                   (recommended on v6e/v7x when a looser tolerance is OK).
    """
    b, n = x.shape
    f, c = _dft_factors(n, modes1, jnp.dtype(compute_dtype).name)
    sub = 16 if jnp.dtype(compute_dtype) == jnp.dtype(jnp.bfloat16) else 8
    b_pad = _round_up(b, sub)
    tb = _pick_batch_tile(b_pad, batch_tile, sub, n,
                          jnp.dtype(compute_dtype).itemsize)
    tn = _pick_col_tile(n)
    return _run(x, f, c, tb=tb, tn=tn, compute_dtype=compute_dtype)


# ----------------------------------------------------------------------------
# Pure-JAX reference matching the PyTorch module.
# ----------------------------------------------------------------------------
def _reference(x, modes1):
    n = x.shape[-1]
    x_ft = jnp.fft.rfft(x, axis=-1, norm="ortho")
    mask = jnp.arange(x_ft.shape[-1]) < modes1
    out_ft = jnp.where(mask[None, :], x_ft, 0.0 + 0.0j)
    return jnp.fft.irfft(out_ft, n=n, axis=-1, norm="ortho").astype(x.dtype)


if __name__ == "__main__":
    B, N = 8, 128
    MODES1 = 16

    key = jax.random.PRNGKey(0)
    x = jax.random.normal(key, (B, N), dtype=jnp.float32)

    y = spectral_truncate(x, modes1=MODES1)
    y = jax.block_until_ready(y)

    y_ref = _reference(x, MODES1)
    assert y.shape == x.shape and y.dtype == x.dtype
    assert jnp.allclose(y, y_ref, atol=1e-4, rtol=1e-4), (
        float(jnp.max(jnp.abs(y - y_ref))))

    print("KERNEL_OK")
</pallas_src>

<mosaic_0001>
module attributes {stable_mosaic.version = 11 : i64} {
  func.func @_spectral_truncate_kernel(%arg0: i32, %arg1: i32, %arg2: memref<8x128xf32, #tpu.memory_space<vmem>>, %arg3: memref<128x128xf32, #tpu.memory_space<vmem>>, %arg4: memref<128x128xf32, #tpu.memory_space<vmem>>, %arg5: memref<8x128xf32, #tpu.memory_space<vmem>>, %arg6: memref<8x128xf32, #tpu.memory_space<vmem>>) attributes {dimension_semantics = [#tpu.dimension_semantics<parallel>, #tpu.dimension_semantics<arbitrary>], iteration_bounds = array<i64: 1, 1>, scalar_prefetch = 0 : i64, scratch_operands = 1 : i64, tpu.core_type = #tpu.core_type<tc>, window_params = [{transform_indices = @transform_0, window_bounds = array<i64: 8, 128>}, {pipeline_mode = #tpu.pipeline_mode<synchronous>, transform_indices = @transform_1, window_bounds = array<i64: 128, 128>}, {transform_indices = @transform_2, window_bounds = array<i64: 128, 128>}, {transform_indices = @transform_3, window_bounds = array<i64: 8, 128>}]} {
    %c0_i32 = arith.constant 0 : i32
    %0 = arith.cmpi eq, %arg1, %c0_i32 : i32
    %1 = arith.extui %0 : i1 to i32
    %c0_i32_0 = arith.constant 0 : i32
    %2 = arith.cmpi ne, %1, %c0_i32_0 : i32
    scf.if %2 {
      %c0_6 = arith.constant 0 : index
      %c0_7 = arith.constant 0 : index
      %7 = vector.load %arg2[%c0_6, %c0_7] : memref<8x128xf32, #tpu.memory_space<vmem>>, vector<8x128xf32>
      %c0_8 = arith.constant 0 : index
      %c0_9 = arith.constant 0 : index
      %8 = vector.load %arg3[%c0_8, %c0_9] : memref<128x128xf32, #tpu.memory_space<vmem>>, vector<128x128xf32>
      %cst_10 = arith.constant dense<0.000000e+00> : vector<8x128xf32>
      %9 = tpu.matmul %7, %8, %cst_10 {dimension_numbers = #tpu.dot_dimension_numbers<[1], [0], [0], [1], [0, 0, 1, 1], [], []>} : vector<8x128xf32>, vector<128x128xf32>, vector<8x128xf32> -> vector<8x128xf32>
      %c0_11 = arith.constant 0 : index
      %c0_12 = arith.constant 0 : index
      %10 = vector.load %arg6[%c0_11, %c0_12] : memref<8x128xf32, #tpu.memory_space<vmem>>, vector<8x128xf32>
      tpu.vector_store %arg6[%c0_11, %c0_12], %9 {strides = array<i32>} : memref<8x128xf32, #tpu.memory_space<vmem>>, vector<8x128xf32>,
    } else {
    }
    %c0 = arith.constant 0 : index
    %c0_1 = arith.constant 0 : index
    %3 = vector.load %arg6[%c0, %c0_1] : memref<8x128xf32, #tpu.memory_space<vmem>>, vector<8x128xf32>
    %c0_2 = arith.constant 0 : index
    %c0_3 = arith.constant 0 : index
    %4 = vector.load %arg4[%c0_2, %c0_3] : memref<128x128xf32, #tpu.memory_space<vmem>>, vector<128x128xf32>
    %cst = arith.constant dense<0.000000e+00> : vector<8x128xf32>
    %5 = tpu.matmul %3, %4, %cst {dimension_numbers = #tpu.dot_dimension_numbers<[1], [0], [0], [1], [0, 0, 1, 1], [], []>} : vector<8x128xf32>, vector<128x128xf32>, vector<8x128xf32> -> vector<8x128xf32>
    %c0_4 = arith.constant 0 : index
    %c0_5 = arith.constant 0 : index
    %6 = vector.load %arg5[%c0_4, %c0_5] : memref<8x128xf32, #tpu.memory_space<vmem>>, vector<8x128xf32>
    tpu.vector_store %arg5[%c0_4, %c0_5], %5 {strides = array<i32>} : memref<8x128xf32, #tpu.memory_space<vmem>>, vector<8x128xf32>,
    return
  }
  func.func @transform_0(%arg0: i32, %arg1: i32) -> (i32, i32) {
    %c0_i32 = arith.constant 0 : i32
    %c0_i32_0 = arith.constant 0 : i32
    return %arg0, %c0_i32 : i32, i32
  }
  func.func @transform_1(%arg0: i32, %arg1: i32) -> (i32, i32) {
    %c0_i32 = arith.constant 0 : i32
    %c0_i32_0 = arith.constant 0 : i32
    %c0_i32_1 = arith.constant 0 : i32
    return %c0_i32, %c0_i32_0 : i32, i32
  }
  func.func @transform_2(%arg0: i32, %arg1: i32) -> (i32, i32) {
    %c0_i32 = arith.constant 0 : i32
    %c0_i32_0 = arith.constant 0 : i32
    return %c0_i32, %arg1 : i32, i32
  }
  func.func @transform_3(%arg0: i32, %arg1: i32) -> (i32, i32) {
    %c0_i32 = arith.constant 0 : i32
    return %arg0, %arg1 : i32, i32
  }
}

</mosaic_0001>

<llo_original>
// kernel: _run.1
$region0: #{_run.1}
  #allocation0 [shape = 'u32[]', space=smem, size = 0x4, offset = 0x4, fixed_abs, tag = 'smem constant byte address 0x4 - core index']
  #allocation1 [shape = 'u32[144,128]{1,0:T(1,128)}', space=vmem, size = 0x12000, scoped, tag = 'internal scratch']
  #allocation2 [shape = 'f32[8,128]{1,0:T(8,128)}', space=vmem, size = 0x1000, scoped, tag = 'scratch operand']
  %s0 = inlined_call_operand.hbm [shape: f32[8,128], index: 0, kind: input, shape index: {}]
  %s1 = inlined_call_operand.hbm [shape: f32[128,128], index: 1, kind: input, shape index: {}]
  %s2 = inlined_call_operand.hbm [shape: f32[128,128], index: 2, kind: input, shape index: {}]
  %s3 = inlined_call_operand.hbm [shape: f32[8,128], index: 3, kind: output, shape index: {}]
  %s4 = sld [smem:[#allocation0]]
  $region38: #{_run.1} parent=0
    _
  %s6 = ssub.s32 1, %s4
  %s7 = scalar_select 0, %s6, %s4
  $region1: #{_run.1} parent=0
    #allocation3 [shape = 'u8[4096]{0}', space=vmem, size = 0x1000, scoped, tag = 'input window, operand 0, single buffered']
    #allocation4 [shape = 's32[1]{0}', space=sflag, size = 0x4, scoped, tag = 'scoped memory for _run.1']
    #allocation5 [shape = 's32[1]{0}', space=sflag, size = 0x4, scoped, tag = 'scoped memory for _run.1']
    #allocation6 [shape = 'u8[65536]{0}', space=vmem, size = 0x10000, scoped, tag = 'input window, operand 1, single buffered']
    #allocation7 [shape = 's32[1]{0}', space=sflag, size = 0x4, scoped, tag = 'scoped memory for _run.1']
    #allocation8 [shape = 'u8[65536]{0}', space=vmem, size = 0x10000, scoped, tag = 'input window, operand 2, single buffered']
    #allocation9 [shape = 'u8[4096]{0}', space=vmem, size = 0x1000, scoped, tag = 'output window, operand 0, single buffered']
    %8 = vsyncpa [#allocation4], 0
    %9 = vsyncpa [#allocation7], 0
    %10 = vsyncpa [#allocation5], 0
    // Predicated region
    $region2: #{_run.1} parent=1 // pred_check
      _
    $region3: #{_run.1} parent=1 // pred_check_branch
      %12 = sbr.rel (0) target = $region5
    $region4: #{_run.1} parent=1 // pred_region
      %s14 = ssub.s32 128, 128
      %15 = vsyncadd [#allocation4], %s14
      %s17 = sshll.u32 [#allocation3], 4
      %s18 = int_to_ptr.vmem [resolvable:$true] %s17
      %20 = dma.hbm_to_vmem [thread:$0]  %s0, 128, %s18, [#allocation4]
    $region5: #{_run.1} parent=1 // pred_fallthru
      _
    // Predicated region
    $region6: #{_run.1} parent=1 // pred_check
      _
    $region7: #{_run.1} parent=1 // pred_check_branch
      %22 = sbr.rel (0) target = $region9
    $region8: #{_run.1} parent=1 // pred_region
      %s24 = ssub.s32 2048, 2048
      %25 = vsyncadd [#allocation7], %s24
      %s26 = sshll.u32 [#allocation6], 4
      %s27 = int_to_ptr.vmem [resolvable:$true] %s26
      %32 = dma.hbm_to_vmem [thread:$0]  %s1, 2048, %s27, [#allocation7], 128, 128, 8
    $region9: #{_run.1} parent=1 // pred_fallthru
      _
    // Predicated region
    $region10: #{_run.1} parent=1 // pred_check
      _
    $region11: #{_run.1} parent=1 // pred_check_branch
      %34 = sbr.rel (0) target = $region13
    $region12: #{_run.1} parent=1 // pred_region
      %s36 = ssub.s32 2048, 2048
      %37 = vsyncadd [#allocation7], %s36
      %s38 = sshll.u32 [#allocation8], 4
      %s39 = int_to_ptr.vmem [resolvable:$true] %s38
      %44 = dma.hbm_to_vmem [thread:$0]  %s2, 2048, %s39, [#allocation7], 128, 128, 8
    $region13: #{_run.1} parent=1 // pred_fallthru
      _
    // Predicated region
    $region14: #{_run.1} parent=1 // pred_check
      _
    $region15: #{_run.1} parent=1 // pred_check_branch
      %46 = sbr.rel (0) target = $region17
    $region16: #{_run.1} parent=1 // pred_region
      %47 = dma.done [#allocation4], 128
    $region17: #{_run.1} parent=1 // pred_fallthru
      _
    // Predicated region
    $region18: #{_run.1} parent=1 // pred_check
      _
    $region19: #{_run.1} parent=1 // pred_check_branch
      %49 = sbr.rel (0) target = $region21
    $region20: #{_run.1} parent=1 // pred_region
      %50 = dma.done [#allocation7], 2048
    $region21: #{_run.1} parent=1 // pred_fallthru
      _
    // Predicated region
    $region22: #{_run.1} parent=1 // pred_check
      _
    $region23: #{_run.1} parent=1 // pred_check_branch
      %52 = sbr.rel (0) target = $region25
    $region24: #{_run.1} parent=1 // pred_region
      %53 = dma.done [#allocation7], 2048
    $region25: #{_run.1} parent=1 // pred_fallthru
      _
    %p54 = scmp.eq.s32.totalorder 0, 0
    // Predicated region
    $region26: #{_run.1} parent=1 // pred_check
      %p55 = pneg %p54
    $region27: #{_run.1} parent=1 // pred_check_branch
      %57 = sbr.rel (%p55) target = $region29
    $region28: #{_run.1} parent=1 // pred_region
      %v58 = vld [vmem:[#allocation3] sm:$0xff]
      %v59 = vld [vmem:[#allocation6] sm:$0xff]
      %v60 = vld [vmem:[#allocation6 + $0x8] sm:$0xff]
      %v61 = vld [vmem:[#allocation6 + $0x10] sm:$0xff]
      %v62 = vld [vmem:[#allocation6 + $0x18] sm:$0xff]
      %v63 = vld [vmem:[#allocation6 + $0x20] sm:$0xff]
      %v64 = vld [vmem:[#allocation6 + $0x28] sm:$0xff]
      %v65 = vld [vmem:[#allocation6 + $0x30] sm:$0xff]
      %v66 = vld [vmem:[#allocation6 + $0x38] sm:$0xff]
      %v67 = vld [vmem:[#allocation6 + $0x40] sm:$0xff]
      %v68 = vld [vmem:[#allocation6 + $0x48] sm:$0xff]
      %v69 = vld [vmem:[#allocation6 + $0x50] sm:$0xff]
      %v70 = vld [vmem:[#allocation6 + $0x58] sm:$0xff]
      %v71 = vld [vmem:[#allocation6 + $0x60] sm:$0xff]
      %v72 = vld [vmem:[#allocation6 + $0x68] sm:$0xff]
      %v73 = vld [vmem:[#allocation6 + $0x70] sm:$0xff]
      %v74 = vld [vmem:[#allocation6 + $0x78] sm:$0xff]
      %75 = vmatprep.subr.mxu0 0.0
      %76 = vmatpush1.msra.mxu0 %v74
      %77 = vmatprep.subr.mxu0 0.0
      %78 = vmatpush1.msra.mxu0 %v73
      %79 = vmatprep.subr.mxu0 0.0
      %80 = vmatpush1.msra.mxu0 %v72
      %81 = vmatprep.subr.mxu0 0.0
      %82 = vmatpush1.msra.mxu0 %v71
      %83 = vmatprep.subr.mxu0 0.0
      %84 = vmatpush1.msra.mxu0 %v70
      %85 = vmatprep.subr.mxu0 0.0
      %86 = vmatpush1.msra.mxu0 %v69
      %87 = vmatprep.subr.mxu0 0.0
      %88 = vmatpush1.msra.mxu0 %v68
      %89 = vmatprep.subr.mxu0 0.0
      %90 = vmatpush1.msra.mxu0 %v67
      %91 = vmatprep.subr.mxu0 0.0
      %92 = vmatpush1.msra.mxu0 %v66
      %93 = vmatprep.subr.mxu0 0.0
      %94 = vmatpush1.msra.mxu0 %v65
      %95 = vmatprep.subr.mxu0 0.0
      %96 = vmatpush1.msra.mxu0 %v64
      %97 = vmatprep.subr.mxu0 0.0
      %98 = vmatpush1.msra.mxu0 %v63
      %99 = vmatprep.subr.mxu0 0.0
      %100 = vmatpush1.msra.mxu0 %v62
      %101 = vmatprep.subr.mxu0 0.0
      %102 = vmatpush1.msra.mxu0 %v61
      %103 = vmatprep.subr.mxu0 0.0
      %104 = vmatpush1.msra.mxu0 %v60
      %105 = vmatprep.subr.mxu0 0.0
      %106 = vmatpush1.msra.mxu0 %v59
      %107 = vmatprep.subr.mxu0 0.0
      %108 = vmatpush2.msra.mxu0 0.0
      %109 = vmatprep.subr.mxu0 0.0
      %110 = vmatpush2.msra.mxu0 0.0
      %111 = vmatprep.subr.mxu0 0.0
      %112 = vmatpush2.msra.mxu0 0.0
      %113 = vmatprep.subr.mxu0 0.0
      %114 = vmatpush2.msra.mxu0 0.0
      %115 = vmatprep.subr.mxu0 0.0
      %116 = vmatpush2.msra.mxu0 0.0
      %117 = vmatprep.subr.mxu0 0.0
      %118 = vmatpush2.msra.mxu0 0.0
      %119 = vmatprep.subr.mxu0 0.0
      %120 = vmatpush2.msra.mxu0 0.0
      %121 = vmatprep.subr.mxu0 0.0
      %122 = vmatpush2.msra.mxu0 0.0
      %123 = vmatprep.subr.mxu0 0.0
      %124 = vmatpush2.msra.mxu0 0.0
      %125 = vmatprep.subr.mxu0 0.0
      %126 = vmatpush2.msra.mxu0 0.0
      %127 = vmatprep.subr.mxu0 0.0
      %128 = vmatpush2.msra.mxu0 0.0
      %129 = vmatprep.subr.mxu0 0.0
      %130 = vmatpush2.msra.mxu0 0.0
      %131 = vmatprep.subr.mxu0 0.0
      %132 = vmatpush2.msra.mxu0 0.0
      %133 = vmatprep.subr.mxu0 0.0
      %134 = vmatpush2.msra.mxu0 0.0
      %135 = vmatprep.subr.mxu0 0.0
      %136 = vmatpush2.msra.mxu0 0.0
      %137 = vmatprep.subr.mxu0 0.0
      %138 = vmatpush2.msra.mxu0 0.0
      %139 = vmatprep.mubr.f32.mxu0 0.0
      %140 = vmatmul.mubr.f32.gmra.mxu0 %v58
      %v141 = vpop.f32.mrf.mxu0
      %v142 = vadd.f32 0.0, %v141
      %v143 = vpop.f32.mrf.mxu0
      %144 = vdwg.mxu0
      %145 = vst [vmem:[#allocation2] sm:$0xff] %v142
    $region29: #{_run.1} parent=1 // pred_fallthru
      _
    %v146 = vld [vmem:[#allocation2] sm:$0xff]
    %v147 = vld [vmem:[#allocation8] sm:$0xff]
    %v148 = vld [vmem:[#allocation8 + $0x8] sm:$0xff]
    %v149 = vld [vmem:[#allocation8 + $0x10] sm:$0xff]
    %v150 = vld [vmem:[#allocation8 + $0x18] sm:$0xff]
    %v151 = vld [vmem:[#allocation8 + $0x20] sm:$0xff]
    %v152 = vld [vmem:[#allocation8 + $0x28] sm:$0xff]
    %v153 = vld [vmem:[#allocation8 + $0x30] sm:$0xff]
    %v154 = vld [vmem:[#allocation8 + $0x38] sm:$0xff]
    %v155 = vld [vmem:[#allocation8 + $0x40] sm:$0xff]
    %v156 = vld [vmem:[#allocation8 + $0x48] sm:$0xff]
    %v157 = vld [vmem:[#allocation8 + $0x50] sm:$0xff]
    %v158 = vld [vmem:[#allocation8 + $0x58] sm:$0xff]
    %v159 = vld [vmem:[#allocation8 + $0x60] sm:$0xff]
    %v160 = vld [vmem:[#allocation8 + $0x68] sm:$0xff]
    %v161 = vld [vmem:[#allocation8 + $0x70] sm:$0xff]
    %v162 = vld [vmem:[#allocation8 + $0x78] sm:$0xff]
    %163 = vmatprep.subr.mxu0 0.0
    %164 = vmatpush1.msra.mxu0 %v162
    %165 = vmatprep.subr.mxu0 0.0
    %166 = vmatpush1.msra.mxu0 %v161
    %167 = vmatprep.subr.mxu0 0.0
    %168 = vmatpush1.msra.mxu0 %v160
    %169 = vmatprep.subr.mxu0 0.0
    %170 = vmatpush1.msra.mxu0 %v159
    %171 = vmatprep.subr.mxu0 0.0
    %172 = vmatpush1.msra.mxu0 %v158
    %173 = vmatprep.subr.mxu0 0.0
    %174 = vmatpush1.msra.mxu0 %v157
    %175 = vmatprep.subr.mxu0 0.0
    %176 = vmatpush1.msra.mxu0 %v156
    %177 = vmatprep.subr.mxu0 0.0
    %178 = vmatpush1.msra.mxu0 %v155
    %179 = vmatprep.subr.mxu0 0.0
    %180 = vmatpush1.msra.mxu0 %v154
    %181 = vmatprep.subr.mxu0 0.0
    %182 = vmatpush1.msra.mxu0 %v153
    %183 = vmatprep.subr.mxu0 0.0
    %184 = vmatpush1.msra.mxu0 %v152
    %185 = vmatprep.subr.mxu0 0.0
    %186 = vmatpush1.msra.mxu0 %v151
    %187 = vmatprep.subr.mxu0 0.0
    %188 = vmatpush1.msra.mxu0 %v150
    %189 = vmatprep.subr.mxu0 0.0
    %190 = vmatpush1.msra.mxu0 %v149
    %191 = vmatprep.subr.mxu0 0.0
    %192 = vmatpush1.msra.mxu0 %v148
    %193 = vmatprep.subr.mxu0 0.0
    %194 = vmatpush1.msra.mxu0 %v147
    %195 = vmatprep.subr.mxu0 0.0
    %196 = vmatpush2.msra.mxu0 0.0
    %197 = vmatprep.subr.mxu0 0.0
    %198 = vmatpush2.msra.mxu0 0.0
    %199 = vmatprep.subr.mxu0 0.0
    %200 = vmatpush2.msra.mxu0 0.0
    %201 = vmatprep.subr.mxu0 0.0
    %202 = vmatpush2.msra.mxu0 0.0
    %203 = vmatprep.subr.mxu0 0.0
    %204 = vmatpush2.msra.mxu0 0.0
    %205 = vmatprep.subr.mxu0 0.0
    %206 = vmatpush2.msra.mxu0 0.0
    %207 = vmatprep.subr.mxu0 0.0
    %208 = vmatpush2.msra.mxu0 0.0
    %209 = vmatprep.subr.mxu0 0.0
    %210 = vmatpush2.msra.mxu0 0.0
    %211 = vmatprep.subr.mxu0 0.0
    %212 = vmatpush2.msra.mxu0 0.0
    %213 = vmatprep.subr.mxu0 0.0
    %214 = vmatpush2.msra.mxu0 0.0
    %215 = vmatprep.subr.mxu0 0.0
    %216 = vmatpush2.msra.mxu0 0.0
    %217 = vmatprep.subr.mxu0 0.0
    %218 = vmatpush2.msra.mxu0 0.0
    %219 = vmatprep.subr.mxu0 0.0
    %220 = vmatpush2.msra.mxu0 0.0
    %221 = vmatprep.subr.mxu0 0.0
    %222 = vmatpush2.msra.mxu0 0.0
    %223 = vmatprep.subr.mxu0 0.0
    %224 = vmatpush2.msra.mxu0 0.0
    %225 = vmatprep.subr.mxu0 0.0
    %226 = vmatpush2.msra.mxu0 0.0
    %227 = vmatprep.mubr.f32.mxu0 0.0
    %228 = vmatmul.mubr.f32.gmra.mxu0 %v146
    %v229 = vpop.f32.mrf.mxu0
    %v230 = vadd.f32 0.0, %v229
    %v231 = vpop.f32.mrf.mxu0
    %232 = vdwg.mxu0
    %233 = vst [vmem:[#allocation9] sm:$0xff] %v230
    // Predicated region
    $region30: #{_run.1} parent=1 // pred_check
      _
    $region31: #{_run.1} parent=1 // pred_check_branch
      %235 = sbr.rel (0) target = $region33
    $region32: #{_run.1} parent=1 // pred_region
      %s237 = ssub.s32 128, 128
      %238 = vsyncadd [#allocation5], %s237
      %s240 = sshll.u32 [#allocation9], 4
      %s241 = int_to_ptr.vmem [resolvable:$true] %s240
      %243 = dma.vmem_to_hbm [thread:$0]  %s241, 128, %s3, [#allocation5]
    $region33: #{_run.1} parent=1 // pred_fallthru
      _
    // Predicated region
    $region34: #{_run.1} parent=1 // pred_check
      _
    $region35: #{_run.1} parent=1 // pred_check_branch
      %245 = sbr.rel (0) target = $region37
    $region36: #{_run.1} parent=1 // pred_region
      %246 = dma.done [#allocation5], 128
    $region37: #{_run.1} parent=1 // pred_fallthru
      _
    %247 = vsyncpa [#allocation4], 1
    %248 = vsyncpa [#allocation7], 1
    %249 = vsyncpa [#allocation5], 1

</llo_original>
